<compile_context>
chip_gen: v6e
topology: v6e:2x2x1
jax: 0.10.0
libtpu: 0.0.40
codegen_flags: <defaults>
</compile_context>

<pallas_src>
import functools
import math

import jax
import jax.numpy as jnp
from jax.experimental import pallas as pl
from jax.experimental.pallas import tpu as pltpu


def _round_up(a, b):
    return (a + b - 1) // b * b


def _layer_norm_kernel(x_ref, gamma_ref, beta_ref, o_ref, *, eps, feat, padded):
    """One row-tile of LayerNorm; normalization axis is the lane axis."""
    x = x_ref[...].astype(jnp.float32)                        # (tr, feat_blk)
    if padded:
        # Feature axis is zero-padded to a 128 multiple, so lane-wide sums equal
        # sums over the true `feat` lanes.  E[x^2]-E[x]^2 avoids any mask ops.
        inv_n = 1.0 / feat
        mean = jnp.sum(x, axis=-1, keepdims=True) * inv_n
        ex2 = jnp.sum(x * x, axis=-1, keepdims=True) * inv_n
        var = jnp.maximum(ex2 - mean * mean, 0.0)
    else:
        # Block feature dim equals the true feature dim: plain per-row moments.
        mean = jnp.mean(x, axis=-1, keepdims=True)
        centered = x - mean
        var = jnp.mean(centered * centered, axis=-1, keepdims=True)
    inv_std = jax.lax.rsqrt(var + eps)
    y = (x - mean) * inv_std
    # gamma/beta are float32; padded gamma/beta lanes are 0 so padded output
    # lanes are 0 (and sliced off in the wrapper anyway).
    o_ref[...] = (gamma_ref[...] * y + beta_ref[...]).astype(o_ref.dtype)


def layer_norm_pallas(x, gamma, beta, parameters_shape, eps=1e-5):
    """LayerNorm over the trailing len(parameters_shape) dims of x."""
    n_norm = len(parameters_shape)
    feat = math.prod(x.shape[x.ndim - n_norm:]) if n_norm else 1
    rows = math.prod(x.shape[: x.ndim - n_norm])

    x2 = x.reshape(rows, feat)
    gamma2 = gamma.astype(jnp.float32).reshape(1, feat)
    beta2 = beta.astype(jnp.float32).reshape(1, feat)

    # Feature-axis layout policy (see header).
    LANE = 128
    if feat % LANE == 0:
        feat_blk, pad_feat = feat, False
    elif feat < 512:
        feat_blk, pad_feat = _round_up(feat, LANE), True
    else:
        feat_blk, pad_feat = feat, False

    if pad_feat:
        pad = feat_blk - feat
        x2 = jnp.pad(x2, ((0, 0), (0, pad)))
        gamma2 = jnp.pad(gamma2, ((0, 0), (0, pad)))
        beta2 = jnp.pad(beta2, ((0, 0), (0, pad)))

    ncols = x2.shape[1]
    itemsize = jnp.dtype(x.dtype).itemsize
    min_tile = {4: 8, 2: 16, 1: 32}.get(itemsize, 8)

    # Generation-gated VMEM budget: scoped limit = 3/4 of physical VMEM,
    # half of that for the (double-buffered) tile footprint.
    try:
        vmem_cap = int(pltpu.get_tpu_info().vmem_capacity_bytes)
    except Exception:
        vmem_cap = 64 * 1024 * 1024
    vmem_limit = vmem_cap * 3 // 4
    tile_budget = vmem_limit // 2 - 4 * ncols * 4            # minus resident gamma/beta

    # Per-row footprint: 2x input + 2x output (double buffering) + ~3 f32 temps.
    bytes_per_row = ncols * (2 * itemsize + 2 * itemsize + 12)
    tr = tile_budget // max(bytes_per_row, 1)
    tr = min(tr, 8192)
    tr = (tr // min_tile) * min_tile
    tr = max(tr, min_tile)
    tr = min(tr, _round_up(rows, min_tile))                   # don't exceed the data

    grid = (pl.cdiv(rows, tr),)

    out2 = pl.pallas_call(
        functools.partial(
            _layer_norm_kernel, eps=eps, feat=feat, padded=pad_feat
        ),
        out_shape=jax.ShapeDtypeStruct((rows, ncols), x.dtype),
        grid=grid,
        in_specs=[
            pl.BlockSpec((tr, ncols), lambda i: (i, 0)),
            pl.BlockSpec((1, ncols), lambda i: (0, 0)),
            pl.BlockSpec((1, ncols), lambda i: (0, 0)),
        ],
        out_specs=pl.BlockSpec((tr, ncols), lambda i: (i, 0)),
        compiler_params=pltpu.CompilerParams(
            dimension_semantics=("parallel",),
            vmem_limit_bytes=vmem_limit,
        ),
    )(x2, gamma2, beta2)

    if pad_feat:
        out2 = out2[:, :feat]
    return out2.reshape(x.shape)


class LayerNormalization:
    """JAX mirror of the PyTorch module; forward runs the Pallas kernel."""

    def __init__(self, parameters_shape, eps=1e-5):
        self.parameters_shape = tuple(parameters_shape)
        self.eps = eps
        # deterministic init matching nn.Parameter(torch.ones/zeros(...))
        self.gamma = jnp.ones(self.parameters_shape, dtype=jnp.float32)
        self.beta = jnp.zeros(self.parameters_shape, dtype=jnp.float32)

    def __call__(self, inputs):
        return layer_norm_pallas(
            inputs, self.gamma, self.beta, self.parameters_shape, self.eps
        )


if __name__ == "__main__":
    key = jax.random.PRNGKey(0)
    batch, seq, hidden = 2, 8, 32
    x = jax.random.normal(key, (batch, seq, hidden), dtype=jnp.float32)

    ln = LayerNormalization(parameters_shape=(hidden,), eps=1e-5)
    out = ln(x)
    out = jax.block_until_ready(out)

    # reference check (pure JAX, same math as the PyTorch forward)
    mean = jnp.mean(x, axis=-1, keepdims=True)
    var = jnp.mean((x - mean) ** 2, axis=-1, keepdims=True)
    ref = ln.gamma * ((x - mean) / jnp.sqrt(var + 1e-5)) + ln.beta
    assert out.shape == x.shape and out.dtype == x.dtype
    assert jnp.max(jnp.abs(out - ref)) < 1e-4

    print("KERNEL_OK")
</pallas_src>

<mosaic_0001>
module attributes {stable_mosaic.version = 11 : i64} {
  func.func @_layer_norm_kernel(%arg0: i32, %arg1: memref<16x128xf32, #tpu.memory_space<vmem>>, %arg2: memref<1x128xf32, #tpu.memory_space<vmem>>, %arg3: memref<1x128xf32, #tpu.memory_space<vmem>>, %arg4: memref<16x128xf32, #tpu.memory_space<vmem>>) attributes {dimension_semantics = [#tpu.dimension_semantics<parallel>], iteration_bounds = array<i64: 1>, scalar_prefetch = 0 : i64, scratch_operands = 0 : i64, tpu.core_type = #tpu.core_type<tc>, window_params = [{transform_indices = @transform_0, window_bounds = array<i64: 16, 128>}, {pipeline_mode = #tpu.pipeline_mode<synchronous>, transform_indices = @transform_1, window_bounds = array<i64: 1, 128>}, {pipeline_mode = #tpu.pipeline_mode<synchronous>, transform_indices = @transform_2, window_bounds = array<i64: 1, 128>}, {transform_indices = @transform_3, window_bounds = array<i64: 16, 128>}]} {
    %c0 = arith.constant 0 : index
    %c0_0 = arith.constant 0 : index
    %0 = vector.load %arg1[%c0, %c0_0] : memref<16x128xf32, #tpu.memory_space<vmem>>, vector<16x128xf32>
    %cst = arith.constant dense<0.000000e+00> : vector<16xf32>
    %1 = vector.multi_reduction <add>, %0, %cst [1] : vector<16x128xf32> to vector<16xf32>
    %2 = vector.shape_cast %1 : vector<16xf32> to vector<16x1xf32>
    %cst_1 = arith.constant 3.125000e-02 : f32
    %3 = vector.broadcast %cst_1 : f32 to vector<16x1xf32>
    %4 = arith.mulf %2, %3 : vector<16x1xf32>
    %5 = arith.mulf %0, %0 : vector<16x128xf32>
    %cst_2 = arith.constant dense<0.000000e+00> : vector<16xf32>
    %6 = vector.multi_reduction <add>, %5, %cst_2 [1] : vector<16x128xf32> to vector<16xf32>
    %7 = vector.shape_cast %6 : vector<16xf32> to vector<16x1xf32>
    %cst_3 = arith.constant 3.125000e-02 : f32
    %8 = vector.broadcast %cst_3 : f32 to vector<16x1xf32>
    %9 = arith.mulf %7, %8 : vector<16x1xf32>
    %10 = arith.mulf %4, %4 : vector<16x1xf32>
    %11 = arith.subf %9, %10 : vector<16x1xf32>
    %cst_4 = arith.constant 0.000000e+00 : f32
    %12 = vector.broadcast %cst_4 : f32 to vector<16x1xf32>
    %13 = arith.maximumf %11, %12 : vector<16x1xf32>
    %cst_5 = arith.constant 9.99999974E-6 : f32
    %14 = vector.broadcast %cst_5 : f32 to vector<16x1xf32>
    %15 = arith.addf %13, %14 : vector<16x1xf32>
    %16 = math.rsqrt %15 : vector<16x1xf32>
    %17 = vector.broadcast %4 : vector<16x1xf32> to vector<16x128xf32>
    %18 = arith.subf %0, %17 : vector<16x128xf32>
    %19 = vector.broadcast %16 : vector<16x1xf32> to vector<16x128xf32>
    %20 = arith.mulf %18, %19 : vector<16x128xf32>
    %c0_6 = arith.constant 0 : index
    %c0_7 = arith.constant 0 : index
    %21 = vector.load %arg2[%c0_6, %c0_7] : memref<1x128xf32, #tpu.memory_space<vmem>>, vector<1x128xf32>
    %22 = vector.broadcast %21 : vector<1x128xf32> to vector<16x128xf32>
    %23 = arith.mulf %22, %20 : vector<16x128xf32>
    %c0_8 = arith.constant 0 : index
    %c0_9 = arith.constant 0 : index
    %24 = vector.load %arg3[%c0_8, %c0_9] : memref<1x128xf32, #tpu.memory_space<vmem>>, vector<1x128xf32>
    %25 = vector.broadcast %24 : vector<1x128xf32> to vector<16x128xf32>
    %26 = arith.addf %23, %25 : vector<16x128xf32>
    %c0_10 = arith.constant 0 : index
    %c0_11 = arith.constant 0 : index
    %27 = vector.load %arg4[%c0_10, %c0_11] : memref<16x128xf32, #tpu.memory_space<vmem>>, vector<16x128xf32>
    tpu.vector_store %arg4[%c0_10, %c0_11], %26 {strides = array<i32>} : memref<16x128xf32, #tpu.memory_space<vmem>>, vector<16x128xf32>,
    return
  }
  func.func @transform_0(%arg0: i32) -> (i32, i32) {
    %c0_i32 = arith.constant 0 : i32
    %c0_i32_0 = arith.constant 0 : i32
    return %arg0, %c0_i32 : i32, i32
  }
  func.func @transform_1(%arg0: i32) -> (i32, i32) {
    %c0_i32 = arith.constant 0 : i32
    %c0_i32_0 = arith.constant 0 : i32
    %c0_i32_1 = arith.constant 0 : i32
    return %c0_i32, %c0_i32_0 : i32, i32
  }
  func.func @transform_2(%arg0: i32) -> (i32, i32) {
    %c0_i32 = arith.constant 0 : i32
    %c0_i32_0 = arith.constant 0 : i32
    %c0_i32_1 = arith.constant 0 : i32
    return %c0_i32, %c0_i32_0 : i32, i32
  }
  func.func @transform_3(%arg0: i32) -> (i32, i32) {
    %c0_i32 = arith.constant 0 : i32
    %c0_i32_0 = arith.constant 0 : i32
    return %arg0, %c0_i32 : i32, i32
  }
}

</mosaic_0001>

<llo_original>
// kernel: tpu_custom_call.1
$region0: #{tpu_custom_call.1}
  #allocation0 [shape = 'u32[]', space=smem, size = 0x4, offset = 0x4, fixed_abs, tag = 'smem constant byte address 0x4 - core index']
  #allocation1 [shape = 'u32[144,128]{1,0:T(1,128)}', space=vmem, size = 0x12000, scoped, tag = 'internal scratch']
  %s0 = inlined_call_operand.hbm [shape: f32[16,128], index: 0, kind: input, shape index: {}]
  %s1 = inlined_call_operand.vmem [shape: f32[1,128], index: 1, kind: input, shape index: {}]
  %s2 = inlined_call_operand.vmem [shape: f32[1,128], index: 2, kind: input, shape index: {}]
  %s3 = inlined_call_operand.hbm [shape: f32[16,128], index: 3, kind: output, shape index: {}]
  %s4 = sld [smem:[#allocation0]]
  $region26: #{tpu_custom_call.1} parent=0
    _
  %s6 = ssub.s32 1, %s4
  %s7 = scalar_select 0, %s6, %s4
  $region1: #{tpu_custom_call.1} parent=0
    #allocation2 [shape = 'u8[8192]{0}', space=vmem, size = 0x2000, scoped, tag = 'input window, operand 0, single buffered']
    #allocation3 [shape = 's32[1]{0}', space=sflag, size = 0x4, scoped, tag = 'scoped memory for tpu_custom_call.1']
    #allocation4 [shape = 's32[1]{0}', space=sflag, size = 0x4, scoped, tag = 'scoped memory for tpu_custom_call.1']
    #allocation5 [shape = 'u8[8192]{0}', space=vmem, size = 0x2000, scoped, tag = 'output window, operand 0, single buffered']
    %8 = vsyncpa [#allocation3], 0
    %9 = vsyncpa [#allocation4], 0
    // Predicated region
    $region2: #{tpu_custom_call.1} parent=1 // pred_check
      _
    $region3: #{tpu_custom_call.1} parent=1 // pred_check_branch
      %11 = sbr.rel (0) target = $region5
    $region4: #{tpu_custom_call.1} parent=1 // pred_region
      %s13 = ssub.s32 256, 256
      %14 = vsyncadd [#allocation3], %s13
      %s15 = sshll.u32 [#allocation2], 4
      %s16 = int_to_ptr.vmem [resolvable:$true] %s15
      %21 = dma.hbm_to_vmem [thread:$0]  %s0, 256, %s16, [#allocation3], 128, 128, 8
    $region5: #{tpu_custom_call.1} parent=1 // pred_fallthru
      _
    // Predicated region
    $region6: #{tpu_custom_call.1} parent=1 // pred_check
      _
    $region7: #{tpu_custom_call.1} parent=1 // pred_check_branch
      %23 = sbr.rel (0) target = $region9
    $region8: #{tpu_custom_call.1} parent=1 // pred_region
      _
    $region9: #{tpu_custom_call.1} parent=1 // pred_fallthru
      _
    // Predicated region
    $region10: #{tpu_custom_call.1} parent=1 // pred_check
      _
    $region11: #{tpu_custom_call.1} parent=1 // pred_check_branch
      %25 = sbr.rel (0) target = $region13
    $region12: #{tpu_custom_call.1} parent=1 // pred_region
      _
    $region13: #{tpu_custom_call.1} parent=1 // pred_fallthru
      _
    // Predicated region
    $region14: #{tpu_custom_call.1} parent=1 // pred_check
      _
    $region15: #{tpu_custom_call.1} parent=1 // pred_check_branch
      %27 = sbr.rel (0) target = $region17
    $region16: #{tpu_custom_call.1} parent=1 // pred_region
      %28 = dma.done [#allocation3], 256
    $region17: #{tpu_custom_call.1} parent=1 // pred_fallthru
      _
    %v29 = vld [vmem:[#allocation2] sm:$0xff]
    %v30 = vld [vmem:[#allocation2 + $0x8] sm:$0xff]
    %31 = vadd.xlane.f32.xlu0 %v29
    %v32 = vpop.xlane.xlu0 %31
    %33 = vadd.xlane.f32.xlu0 %v30
    %v34 = vpop.xlane.xlu0 %33
    %v35 = vmul.f32 %v32, 0.03125
    %v36 = vmul.f32 %v34, 0.03125
    %v37 = vmul.f32 %v29, %v29
    %v38 = vmul.f32 %v30, %v30
    %39 = vadd.xlane.f32.xlu0 %v37
    %v40 = vpop.xlane.xlu0 %39
    %41 = vadd.xlane.f32.xlu0 %v38
    %v42 = vpop.xlane.xlu0 %41
    %v43 = vmul.f32 %v40, 0.03125
    %v44 = vmul.f32 %v42, 0.03125
    %v45 = vmul.f32 %v35, %v35
    %v46 = vmul.f32 %v36, %v36
    %v47 = vsub.f32 %v43, %v45
    %v48 = vsub.f32 %v44, %v46
    %v49 = vmax.f32 %v47, 0.0
    %v50 = vmax.f32 %v48, 0.0
    %v51 = vadd.f32 %v49, 1e-05
    %v52 = vadd.f32 %v50, 1e-05
    %v53 = vrsqrt.pop %v51
    %v54 = vrsqrt.pop %v52
    %v55 = vsub.f32 %v29, %v35
    %v56 = vsub.f32 %v30, %v36
    %v57 = vmul.f32 %v55, %v53
    %v58 = vmul.f32 %v56, %v54
    %v59 = vld [vmem:[%s1] sm:$0x1]
    %v61 = vlaneseq
    %v62 = vshrl.u32 %v61, 7
    %v63 = vsub.s32 0, %v62
    %v64 = vrot.slane %v59, %v63
    %v66 = vmul.f32 %v64, %v57
    %v67 = vmul.f32 %v64, %v58
    %v68 = vld [vmem:[%s2] sm:$0x1]
    %v70 = vlaneseq
    %v71 = vshrl.u32 %v70, 7
    %v72 = vsub.s32 0, %v71
    %v73 = vrot.slane %v68, %v72
    %v75 = vadd.f32 %v66, %v73
    %v76 = vadd.f32 %v67, %v73
    %77 = vst [vmem:[#allocation5] sm:$0xff] %v75
    %78 = vst [vmem:[#allocation5 + $0x8] sm:$0xff] %v76
    // Predicated region
    $region18: #{tpu_custom_call.1} parent=1 // pred_check
      _
    $region19: #{tpu_custom_call.1} parent=1 // pred_check_branch
      %80 = sbr.rel (0) target = $region21
    $region20: #{tpu_custom_call.1} parent=1 // pred_region
      %s82 = ssub.s32 256, 256
      %83 = vsyncadd [#allocation4], %s82
      %s84 = sshll.u32 [#allocation5], 4
      %s85 = int_to_ptr.vmem [resolvable:$true] %s84
      %90 = dma.vmem_to_hbm [thread:$0]  %s85, 256, %s3, [#allocation4], 128, 128, 8
    $region21: #{tpu_custom_call.1} parent=1 // pred_fallthru
      _
    // Predicated region
    $region22: #{tpu_custom_call.1} parent=1 // pred_check
      _
    $region23: #{tpu_custom_call.1} parent=1 // pred_check_branch
      %92 = sbr.rel (0) target = $region25
    $region24: #{tpu_custom_call.1} parent=1 // pred_region
      %93 = dma.done [#allocation4], 256
    $region25: #{tpu_custom_call.1} parent=1 // pred_fallthru
      _
    %94 = vsyncpa [#allocation3], 1
    %95 = vsyncpa [#allocation4], 1

</llo_original>
